<compile_context>
chip_gen: v5e
topology: v5e:2x2
jax: 0.10.0
libtpu: 0.0.40
codegen_flags: <defaults>
</compile_context>

<pallas_src>
import functools
import math

import jax
import jax.numpy as jnp
from jax import lax
from jax.experimental import pallas as pl
from jax.experimental.pallas import tpu as pltpu


_VMEM_LIMIT_BYTES = 32 * 1024 * 1024   # explicit; safe on v5e/v6e/v7x


def _pick_tile(dim: int, prefs, *, name: str = "dim", max_full: int = 2048) -> int:
    """Largest preferred tile that evenly divides `dim`, else the full dim.

    Hardened: refuses to silently fall back to a single giant tile that would
    blow the scoped VMEM budget (pad the dimension to a multiple of 128
    instead of relying on the fallback for large, non-divisible extents).
    """
    for p in prefs:
        if p <= dim and dim % p == 0:
            return p
    if dim > max_full:
        raise ValueError(
            f"{name}={dim} has no preferred tile divisor in {prefs}; a single "
            f"{dim}-wide tile would exceed the VMEM budget -- pad {name} to a "
            f"multiple of 128 instead.")
    return dim


# ----------------------- Generic bias-free linear (matmul) ----------------------- #
def _linear_kernel(x_ref, w_ref, o_ref, acc_ref):
    ci = pl.program_id(3)

    @pl.when(ci == 0)
    def _():
        acc_ref[...] = jnp.zeros(acc_ref.shape, acc_ref.dtype)

    x = x_ref[0]                      # (tt, tk)  bf16
    w = w_ref[...]                    # (tn, tk)  PyTorch (out, in) layout, no .T
    acc_ref[...] += lax.dot_general(
        x, w, (((1,), (1,)), ((), ())), preferred_element_type=jnp.float32)

    @pl.when(ci == pl.num_programs(3) - 1)
    def _():
        o_ref[0] = acc_ref[...].astype(o_ref.dtype)


def linear_nobias(x, w, *, out_dtype=None,
                  tt_prefs=(512, 256, 128),
                  tn_prefs=(512, 256, 128),
                  tk_prefs=(512, 256, 128)):
    """x: (B, T, K); w: (N, K) PyTorch Linear layout. Returns (B, T, N)."""
    B, T, K = x.shape
    N, K2 = w.shape
    assert K == K2
    out_dtype = x.dtype if out_dtype is None else out_dtype
    tt = _pick_tile(T, tt_prefs, name="T")
    tn = _pick_tile(N, tn_prefs, name="N")
    tk = _pick_tile(K, tk_prefs, name="K")
    grid = (B, T // tt, N // tn, K // tk)
    return pl.pallas_call(
        _linear_kernel,
        out_shape=jax.ShapeDtypeStruct((B, T, N), out_dtype),
        grid_spec=pltpu.PrefetchScalarGridSpec(
            num_scalar_prefetch=0,
            grid=grid,
            in_specs=[
                pl.BlockSpec((1, tt, tk), lambda b, ti, ni, ci: (b, ti, ci)),
                pl.BlockSpec((tn, tk), lambda b, ti, ni, ci: (ni, ci)),
            ],
            out_specs=pl.BlockSpec((1, tt, tn), lambda b, ti, ni, ci: (b, ti, ni)),
            scratch_shapes=[pltpu.VMEM((tt, tn), jnp.float32)],
        ),
        compiler_params=pltpu.CompilerParams(
            dimension_semantics=("parallel", "parallel", "parallel", "arbitrary"),
            vmem_limit_bytes=_VMEM_LIMIT_BYTES),
    )(x, w)


# -------------------------- Flash attention (online softmax) ---------------- #
def _flash_kernel(q_ref, k_ref, v_ref, o_ref, m_sc, l_sc, acc_sc, *,
                  n_heads, head_dim, scale):
    ki = pl.program_id(2)

    @pl.when(ki == 0)
    def _():
        m_sc[...] = jnp.full(m_sc.shape, -jnp.inf, dtype=m_sc.dtype)
        l_sc[...] = jnp.zeros(l_sc.shape, l_sc.dtype)
        acc_sc[...] = jnp.zeros(acc_sc.shape, acc_sc.dtype)

    hd = head_dim
    for h in range(n_heads):                 # static unroll; column views are free
        c0 = h * hd
        q_h = q_ref[0, :, c0:c0 + hd]        # (tq,  hd) bf16
        k_h = k_ref[0, :, c0:c0 + hd]        # (tkv, hd) bf16
        v_h = v_ref[0, :, c0:c0 + hd]        # (tkv, hd) bf16

        # Single fused scale = (1/sqrt(hd) from the module) * (1/sqrt(hd) from SDPA).
        s = lax.dot_general(q_h, k_h, (((1,), (1,)), ((), ())),
                            preferred_element_type=jnp.float32) * scale   # (tq, tkv) f32

        m_prev = m_sc[h]                                            # (tq, 128) replicated
        s_max = jnp.max(s, axis=-1, keepdims=True)                  # (tq, 1)
        m_new = jnp.maximum(m_prev, s_max)                          # (tq, 128)
        m_new1 = m_new[:, 0:1]                                      # (tq, 1)
        alpha1 = jnp.exp(m_prev[:, 0:1] - m_new1)                   # (tq, 1)  f32
        # exp in the compute dtype feeds the p@V MXU op directly (bf16 EUP on
        # v6e/v7x); the row sum still accumulates in f32.
        p = jnp.exp((s - m_new1).astype(v_ref.dtype))               # (tq, tkv)
        row_sum = jnp.sum(p, axis=-1, keepdims=True, dtype=jnp.float32)
        l_sc[h] = alpha1 * l_sc[h] + row_sum
        pv = lax.dot_general(p, v_h, (((1,), (0,)), ((), ())),
                             preferred_element_type=jnp.float32)    # (tq, hd) f32
        acc_sc[:, c0:c0 + hd] = alpha1 * acc_sc[:, c0:c0 + hd] + pv
        m_sc[h] = m_new

    @pl.when(ki == pl.num_programs(2) - 1)
    def _():
        for h in range(n_heads):
            c0 = h * hd
            inv = pl.reciprocal(l_sc[h][:, 0:1], approx=True)       # (tq, 1)
            o_ref[0, :, c0:c0 + hd] = (acc_sc[:, c0:c0 + hd] * inv).astype(o_ref.dtype)
    # TODO(synk): attn-dropout / causal masking are no-ops for this module
    # (eval mode, is_causal=False); a causal variant would mask `s` here.
    # TODO(synk): the output projection could be fused into this epilogue to
    # remove the y HBM round trip entirely.


def flash_attention(qkv, *, n_heads, head_dim, scale):
    """qkv: (B, T, 3C) with [q | k | v] column layout. Returns y as (B, T, C)."""
    B, T, C3 = qkv.shape
    C = C3 // 3
    assert C == n_heads * head_dim
    assert C % 128 == 0, "embed_dim must be a multiple of 128 for lane-dense qkv blocks"
    tq = _pick_tile(T, (512, 256, 128), name="T(q)")
    tkv = _pick_tile(T, (1024, 512, 256, 128), name="T(kv)")
    grid = (B, T // tq, T // tkv)
    kernel = functools.partial(_flash_kernel, n_heads=n_heads,
                               head_dim=head_dim, scale=scale)
    return pl.pallas_call(
        kernel,
        out_shape=jax.ShapeDtypeStruct((B, T, C), qkv.dtype),
        grid_spec=pltpu.PrefetchScalarGridSpec(
            num_scalar_prefetch=0,
            grid=grid,
            in_specs=[
                pl.BlockSpec((1, tq, C), lambda b, qi, ki: (b, qi, 0)),   # q cols
                pl.BlockSpec((1, tkv, C), lambda b, qi, ki: (b, ki, 1)),  # k cols
                pl.BlockSpec((1, tkv, C), lambda b, qi, ki: (b, ki, 2)),  # v cols
            ],
            out_specs=pl.BlockSpec((1, tq, C), lambda b, qi, ki: (b, qi, 0)),
            scratch_shapes=[
                pltpu.VMEM((n_heads, tq, 128), jnp.float32),   # running max (lane-dense)
                pltpu.VMEM((n_heads, tq, 128), jnp.float32),   # running denom
                pltpu.VMEM((tq, C), jnp.float32),              # accumulator (all heads)
            ],
        ),
        compiler_params=pltpu.CompilerParams(
            dimension_semantics=("parallel", "parallel", "arbitrary"),
            vmem_limit_bytes=_VMEM_LIMIT_BYTES),
    )(qkv, qkv, qkv)


# ---------------------------------- Wrapper ---------------------------------- #
def self_attention(x, w_in, w_out, *, n_heads, compute_dtype=jnp.bfloat16):
    """x: (B,T,C); w_in: (3C,C); w_out: (C,C) in PyTorch Linear (out, in) layout."""
    B, T, C = x.shape
    H = n_heads
    assert C % H == 0
    hd = C // H
    out_dtype = x.dtype

    # bf16 matmul operands + bf16 intermediates (f32 accumulation inside kernels).
    xc = x.astype(compute_dtype)
    w_in_c = w_in.astype(compute_dtype)
    w_out_c = w_out.astype(compute_dtype)

    qkv = linear_nobias(xc, w_in_c, out_dtype=compute_dtype)          # (B, T, 3C)
    scale = 1.0 / float(hd)   # module's q/sqrt(hd) * SDPA's own 1/sqrt(hd)
    y = flash_attention(qkv, n_heads=H, head_dim=hd, scale=scale)     # (B, T, C)
    return linear_nobias(y, w_out_c, out_dtype=out_dtype)             # (B, T, C)
    # TODO(synk): resid_dropout / attn_dropout are no-ops at inference (omitted).


# --------------------------------- Reference --------------------------------- #
def self_attention_ref(x, w_in, w_out, *, n_heads):
    """Pure-JAX reference matching the PyTorch forward (eval mode)."""
    B, T, C = x.shape
    H = n_heads
    hd = C // H
    qkv = jnp.einsum('btc,oc->bto', x, w_in)              # (B, T, 3C)
    q, k, v = jnp.split(qkv, 3, axis=-1)

    def to_heads(t):
        return t.reshape(B, T, H, hd).transpose(0, 2, 1, 3)   # (B, H, T, hd)

    q, k, v = to_heads(q), to_heads(k), to_heads(v)
    q = q / math.sqrt(float(hd))
    s = jnp.einsum('bhtd,bhsd->bhts', q, k) / math.sqrt(float(hd))
    p = jax.nn.softmax(s, axis=-1)
    y = jnp.einsum('bhts,bhsd->bhtd', p, v)
    y = y.transpose(0, 2, 1, 3).reshape(B, T, C)
    return jnp.einsum('btc,oc->bto', y, w_out)


if __name__ == "__main__":
    # Small, TPU-friendly shapes consistent with the module:
    # B=2, T=128, embed_dim=256, 2 heads (head_dim=128).
    B, T, C, H = 2, 128, 256, 2
    key = jax.random.PRNGKey(0)
    kx, kin, kout = jax.random.split(key, 3)

    x = jax.random.normal(kx, (B, T, C), dtype=jnp.float32)
    bound = 1.0 / math.sqrt(C)
    w_in = jax.random.uniform(kin, (3 * C, C), jnp.float32, -bound, bound)
    w_out = jax.random.uniform(kout, (C, C), jnp.float32, -bound, bound)

    y = self_attention(x, w_in, w_out, n_heads=H)
    y = jax.block_until_ready(y)

    y_ref = self_attention_ref(x, w_in, w_out, n_heads=H)
    assert y.shape == (B, T, C)
    max_err = float(jnp.max(jnp.abs(y - y_ref)))
    assert jnp.allclose(y, y_ref, atol=3e-2, rtol=3e-2), (
        f"mismatch vs reference: max abs diff {max_err}")
    print("KERNEL_OK")
</pallas_src>

<mosaic_0001>
module attributes {stable_mosaic.version = 11 : i64} {
  func.func @_linear_kernel(%arg0: i32, %arg1: i32, %arg2: i32, %arg3: i32, %arg4: memref<1x128x256xbf16, #tpu.memory_space<vmem>>, %arg5: memref<256x256xbf16, #tpu.memory_space<vmem>>, %arg6: memref<1x128x256xbf16, #tpu.memory_space<vmem>>, %arg7: memref<128x256xf32, #tpu.memory_space<vmem>>) attributes {dimension_semantics = [#tpu.dimension_semantics<parallel>, #tpu.dimension_semantics<parallel>, #tpu.dimension_semantics<parallel>, #tpu.dimension_semantics<arbitrary>], iteration_bounds = array<i64: 2, 1, 3, 1>, scalar_prefetch = 0 : i64, scratch_operands = 1 : i64, tpu.core_type = #tpu.core_type<tc>, window_params = [{transform_indices = @transform_0, window_bounds = array<i64: 1, 128, 256>}, {transform_indices = @transform_1, window_bounds = array<i64: 256, 256>}, {transform_indices = @transform_2, window_bounds = array<i64: 1, 128, 256>}]} {
    %c0_i32 = arith.constant 0 : i32
    %0 = arith.cmpi eq, %arg3, %c0_i32 : i32
    %1 = arith.extui %0 : i1 to i32
    %c0_i32_0 = arith.constant 0 : i32
    %2 = arith.cmpi ne, %1, %c0_i32_0 : i32
    scf.if %2 {
      %cst_11 = arith.constant 0.000000e+00 : f32
      %13 = vector.broadcast %cst_11 : f32 to vector<128x256xf32>
      %c0_12 = arith.constant 0 : index
      %c0_13 = arith.constant 0 : index
      %14 = vector.load %arg7[%c0_12, %c0_13] : memref<128x256xf32, #tpu.memory_space<vmem>>, vector<128x256xf32>
      tpu.vector_store %arg7[%c0_12, %c0_13], %13 {strides = array<i32>} : memref<128x256xf32, #tpu.memory_space<vmem>>, vector<128x256xf32>,
    } else {
    }
    %c0 = arith.constant 0 : index
    %c0_1 = arith.constant 0 : index
    %c0_2 = arith.constant 0 : index
    %3 = vector.load %arg4[%c0, %c0_1, %c0_2] : memref<1x128x256xbf16, #tpu.memory_space<vmem>>, vector<1x128x256xbf16>
    %4 = vector.shape_cast %3 : vector<1x128x256xbf16> to vector<128x256xbf16>
    %c0_3 = arith.constant 0 : index
    %c0_4 = arith.constant 0 : index
    %5 = vector.load %arg5[%c0_3, %c0_4] : memref<256x256xbf16, #tpu.memory_space<vmem>>, vector<256x256xbf16>
    %c0_5 = arith.constant 0 : index
    %c0_6 = arith.constant 0 : index
    %6 = vector.load %arg7[%c0_5, %c0_6] : memref<128x256xf32, #tpu.memory_space<vmem>>, vector<128x256xf32>
    %cst = arith.constant dense<0.000000e+00> : vector<128x256xf32>
    %7 = tpu.matmul %4, %5, %cst {dimension_numbers = #tpu.dot_dimension_numbers<[1], [1], [0], [0], [0, 0, 1, 0], [], []>} : vector<128x256xbf16>, vector<256x256xbf16>, vector<128x256xf32> -> vector<128x256xf32>
    %8 = arith.addf %6, %7 : vector<128x256xf32>
    %c0_7 = arith.constant 0 : index
    %c0_8 = arith.constant 0 : index
    %9 = vector.load %arg7[%c0_7, %c0_8] : memref<128x256xf32, #tpu.memory_space<vmem>>, vector<128x256xf32>
    tpu.vector_store %arg7[%c0_7, %c0_8], %8 {strides = array<i32>} : memref<128x256xf32, #tpu.memory_space<vmem>>, vector<128x256xf32>,
    %c0_i32_9 = arith.constant 0 : i32
    %10 = arith.cmpi eq, %arg3, %c0_i32_9 : i32
    %11 = arith.extui %10 : i1 to i32
    %c0_i32_10 = arith.constant 0 : i32
    %12 = arith.cmpi ne, %11, %c0_i32_10 : i32
    scf.if %12 {
      %c0_11 = arith.constant 0 : index
      %c0_12 = arith.constant 0 : index
      %13 = vector.load %arg7[%c0_11, %c0_12] : memref<128x256xf32, #tpu.memory_space<vmem>>, vector<128x256xf32>
      %14 = arith.truncf %13 : vector<128x256xf32> to vector<128x256xbf16>
      %c0_13 = arith.constant 0 : index
      %c0_14 = arith.constant 0 : index
      %c0_15 = arith.constant 0 : index
      %15 = vector.load %arg6[%c0_13, %c0_14, %c0_15] : memref<1x128x256xbf16, #tpu.memory_space<vmem>>, vector<1x128x256xbf16>
      %16 = vector.shape_cast %15 : vector<1x128x256xbf16> to vector<128x256xbf16>
      %17 = vector.shape_cast %14 : vector<128x256xbf16> to vector<1x128x256xbf16>
      tpu.vector_store %arg6[%c0_13, %c0_14, %c0_15], %17 {strides = array<i32>} : memref<1x128x256xbf16, #tpu.memory_space<vmem>>, vector<1x128x256xbf16>,
    } else {
    }
    return
  }
  func.func @transform_0(%arg0: i32, %arg1: i32, %arg2: i32, %arg3: i32) -> (i32, i32, i32) {
    %c0_i32 = arith.constant 0 : i32
    return %arg0, %arg1, %arg3 : i32, i32, i32
  }
  func.func @transform_1(%arg0: i32, %arg1: i32, %arg2: i32, %arg3: i32) -> (i32, i32) {
    %c0_i32 = arith.constant 0 : i32
    return %arg2, %arg3 : i32, i32
  }
  func.func @transform_2(%arg0: i32, %arg1: i32, %arg2: i32, %arg3: i32) -> (i32, i32, i32) {
    %c0_i32 = arith.constant 0 : i32
    return %arg0, %arg1, %arg2 : i32, i32, i32
  }
}

</mosaic_0001>

<llo_original>
// kernel: tpu_custom_call.1
$region0: #{tpu_custom_call.1}
  #allocation0 [shape = 'u32[]', space=smem, size = 0x4, offset = 0x4, fixed_abs, tag = 'smem constant byte address 0x4 - core index']
  #allocation1 [shape = 'u32[72,128]{1,0:T(1,128)}', space=vmem, size = 0x9000, scoped, tag = 'internal scratch']
  #allocation2 [shape = 'f32[128,256]{1,0:T(8,128)}', space=vmem, size = 0x20000, scoped, tag = 'scratch operand']
  %s0 = inlined_call_operand.hbm [shape: bf16[2,128,256], index: 0, kind: input, shape index: {}]
  %s1 = inlined_call_operand.hbm [shape: bf16[768,256], index: 1, kind: input, shape index: {}]
  %s2 = inlined_call_operand.hbm [shape: bf16[2,128,768], index: 2, kind: output, shape index: {}]
  %s3 = sld [smem:[#allocation0]]
  $region57: #{tpu_custom_call.1} parent=0
    _
  %s5 = ssub.s32 1, %s3
  %s6 = scalar_select 0, %s5, %s3
  $region1: #{tpu_custom_call.1} parent=0
    #allocation3 [shape = 'u8[131072]{0}', space=vmem, size = 0x20000, scoped, tag = 'input window, operand 0']
    #allocation4 [shape = 's32[2]{0}', space=sflag, size = 0x8, scoped, tag = 'scoped memory for tpu_custom_call.1']
    #allocation5 [shape = 's32[2]{0}', space=sflag, size = 0x8, scoped, tag = 'scoped memory for tpu_custom_call.1']
    #allocation6 [shape = 'u8[262144]{0}', space=vmem, size = 0x40000, scoped, tag = 'input window, operand 1']
    #allocation7 [shape = 's32[2]{0}', space=sflag, size = 0x8, scoped, tag = 'scoped memory for tpu_custom_call.1']
    #allocation8 [shape = 'u8[131072]{0}', space=vmem, size = 0x20000, scoped, tag = 'output window, operand 0']
    %7 = vsyncpa [#allocation4], 0
    %s8 = scalar_lea.sflag [#allocation4], 1
    %9 = vsyncpa %s8, 0
    %10 = vsyncpa [#allocation7], 0
    %s11 = scalar_lea.sflag [#allocation7], 1
    %12 = vsyncpa %s11, 0
    %13 = vsyncpa [#allocation5], 0
    %s14 = scalar_lea.sflag [#allocation5], 1
    %15 = vsyncpa %s14, 0
    loop: start=0, step=1, limit=8
    $region2: #{tpu_custom_call.1} parent=1 // loop_pre_header
      _
    $region3: #{tpu_custom_call.1} parent=1 // loop_header
      %s17 = sphi 0, %s21
      %p18 = scmp.ge.s32.totalorder %s17, 8
      %s24 = sphi 0, %s50
      %s25 = sphi 0, %s46
      %s26 = sphi 0, %s42
      %s27 = sphi 0, %s38
      %s28 = sphi 0, %s24
      %s29 = sphi 0, %s25
      %s30 = sphi 0, %s26
      %s31 = sphi 0, %s27
      %s32 = sphi 0, %s28
      %s33 = sphi 0, %s29
      %s34 = sphi 0, %s30
      %s35 = sphi 0, %s31
      %s57 = sphi 0, %s59
      %s60 = sphi 0, %s57
      %s61 = sphi 0, %s60
      %s77 = sphi 0, %s61
      %s85 = sphi 0, %s87
      %s88 = sphi 0, %s85
      %s89 = sphi 0, %s88
      %s105 = sphi 0, %s89
      %s115 = sphi 0, %s117
      %s118 = sphi 0, %s115
      %s119 = sphi 0, %s118
      %s135 = sphi 0, %s119
    $region4: #{tpu_custom_call.1} parent=1 // loop_header_branch
      %20 = sbr.rel (%p18) target = $region8
    $region5: #{tpu_custom_call.1} parent=1 // loop_body
      %s22 = ssub.s32 %s17, 1
      %s23 = ssub.s32 %s17, 2
      %s36 = sadd.s32 1, %s27
      %p37 = scmp.ge.s32.totalorder %s36, 1
      %s38 = scalar_select %p37, 0, %s36
      %s39 = sadd.s32 1, %s26
      %s40 = scalar_select %p37, %s39, %s26
      %p41 = scmp.ge.s32.totalorder %s40, 3
      %s42 = scalar_select %p41, 0, %s40
      %s43 = sadd.s32 1, %s25
      %s44 = scalar_select %p41, %s43, %s25
      %p45 = scmp.ge.s32.totalorder %s44, 1
      %s46 = scalar_select %p45, 0, %s44
      %s47 = sadd.s32 1, %s24
      %s48 = scalar_select %p45, %s47, %s24
      %p49 = scmp.ge.s32.totalorder %s48, 2
      %s50 = scalar_select %p49, 0, %s48
      %s51 = ssub.s32 %s24, %s50
      %s52 = ssub.s32 %s25, %s46
      %s53 = sor.u32 %s51, %s52
      %s54 = ssub.s32 %s27, %s38
      %s55 = sor.u32 %s53, %s54
      %p56 = scmp.eq.s32.totalorder %s55, 0
      %s58 = sadd.s32 %s57, 1
      %s59 = scalar_select %p56, %s57, %s58
      %p62 = pneg %p56
      %p63 = scmp.eq.s32.totalorder %s17, 5
      %p64 = por %p62, %p63
      %p65 = scmp.ne.s32.totalorder %s57, %s60
      %p66 = scmp.eq.s32.totalorder %s17, 0
      %p67 = por %p65, %p66
      %p68 = scmp.ne.s32.totalorder %s57, %s60
      %p69 = scmp.eq.s32.totalorder %s22, 5
      %p70 = por %p68, %p69
      %p71 = scmp.ne.s32.totalorder %s60, %s61
      %p72 = scmp.eq.s32.totalorder %s22, 0
      %p73 = por %p71, %p72
      %p74 = scmp.ne.s32.totalorder %s60, %s61
      %p75 = scmp.eq.s32.totalorder %s23, 5
      %p76 = por %p74, %p75
      %p78 = scmp.ne.s32.totalorder %s61, %s77
      %p79 = scmp.eq.s32.totalorder %s23, 0
      %p80 = por %p78, %p79
      %s81 = ssub.s32 %s26, %s42
      %s82 = ssub.s32 %s27, %s38
      %s83 = sor.u32 %s81, %s82
      %p84 = scmp.eq.s32.totalorder %s83, 0
      %s86 = sadd.s32 %s85, 1
      %s87 = scalar_select %p84, %s85, %s86
      %p90 = pneg %p84
      %p91 = scmp.eq.s32.totalorder %s17, 5
      %p92 = por %p90, %p91
      %p93 = scmp.ne.s32.totalorder %s85, %s88
      %p94 = scmp.eq.s32.totalorder %s17, 0
      %p95 = por %p93, %p94
      %p96 = scmp.ne.s32.totalorder %s85, %s88
      %p97 = scmp.eq.s32.totalorder %s22, 5
      %p98 = por %p96, %p97
      %p99 = scmp.ne.s32.totalorder %s88, %s89
      %p100 = scmp.eq.s32.totalorder %s22, 0
      %p101 = por %p99, %p100
      %p102 = scmp.ne.s32.totalorder %s88, %s89
      %p103 = scmp.eq.s32.totalorder %s23, 5
      %p104 = por %p102, %p103
      %p106 = scmp.ne.s32.totalorder %s89, %s105
      %p107 = scmp.eq.s32.totalorder %s23, 0
      %p108 = por %p106, %p107
      %s109 = ssub.s32 %s24, %s50
      %s110 = ssub.s32 %s25, %s46
      %s111 = sor.u32 %s109, %s110
      %s112 = ssub.s32 %s26, %s42
      %s113 = sor.u32 %s111, %s112
      %p114 = scmp.eq.s32.totalorder %s113, 0
      %s116 = sadd.s32 %s115, 1
      %s117 = scalar_select %p114, %s115, %s116
      %p120 = pneg %p114
      %p121 = scmp.eq.s32.totalorder %s17, 5
      %p122 = por %p120, %p121
      %p123 = scmp.ne.s32.totalorder %s115, %s118
      %p124 = scmp.eq.s32.totalorder %s17, 0
      %p125 = por %p123, %p124
      %p126 = scmp.ne.s32.totalorder %s115, %s118
      %p127 = scmp.eq.s32.totalorder %s22, 5
      %p128 = por %p126, %p127
      %p129 = scmp.ne.s32.totalorder %s118, %s119
      %p130 = scmp.eq.s32.totalorder %s22, 0
      %p131 = por %p129, %p130
      %p132 = scmp.ne.s32.totalorder %s118, %s119
      %p133 = scmp.eq.s32.totalorder %s23, 5
      %p134 = por %p132, %p133
      %p136 = scmp.ne.s32.totalorder %s119, %s135
      %p137 = scmp.eq.s32.totalorder %s23, 0
      %p138 = por %p136, %p137
      %p139 = scmp.le.s32.totalorder 1, %s17
      %p140 = scmp.lt.s32.totalorder %s17, 7
      %p141 = pnand %p139, %p140
      %p142 = pneg %p141
      // Predicated region
      $region9: #{tpu_custom_call.1} parent=5 // pred_check
        _
      $region10: #{tpu_custom_call.1} parent=5 // pred_check_branch
        %144 = sbr.rel (%p141) target = $region12
      $region11: #{tpu_custom_call.1} parent=5 // pred_region
        %s145 = ssub.s32 %s17, 1
      $region12: #{tpu_custom_call.1} parent=5 // pred_fallthru
        _
      %p146 = scmp.lt.s32.totalorder %s17, 6
      // Predicated region
      $region13: #{tpu_custom_call.1} parent=5 // pred_check
        %p147 = pneg %p146
      $region14: #{tpu_custom_call.1} parent=5 // pred_check_branch
        %149 = sbr.rel (%p147) target = $region16
      $region15: #{tpu_custom_call.1} parent=5 // pred_region
        // Predicated region
        $region17: #{tpu_custom_call.1} parent=15 // pred_check
          %p150 = pneg %p67
        $region18: #{tpu_custom_call.1} parent=15 // pred_check_branch
          %152 = sbr.rel (%p150) target = $region20
        $region19: #{tpu_custom_call.1} parent=15 // pred_region
          %s153 = sand.u32 %s57, 1
          %s154 = scalar_lea.sflag [#allocation4], %s153
          %s155 = sand.u32 %s57, 1
          %s156 = smul.addr %s155, 128
          %s157 = scalar_lea.vmem [#allocation3], %s156
          %s158 = smul.u32 16, %s25
          %s159 = smul.u32 2, %s27
          %161 = vsyncadd %s154, 0
          %s162 = smul.addr %s158, 2
          %s163 = sadd.s32 %s159, %s162
          %s164 = smul.addr %s24, 32
          %s165 = sadd.s32 %s163, %s164
          %s166 = smul.addr %s165, 4
          %s167 = scalar_lea.hbm %s0, %s166
          %s168 = sshll.u32 %s167, 4
          %s169 = int_to_ptr.hbm [resolvable:$true] %s168
          %s170 = sshll.u32 %s157, 4
          %s171 = int_to_ptr.vmem [resolvable:$true] %s170
          %176 = dma.hbm_to_vmem [thread:$0]  %s169, 2048, %s171, %s154, 128, 128, 8
        $region20: #{tpu_custom_call.1} parent=15 // pred_fallthru
          _
        // Predicated region
        $region21: #{tpu_custom_call.1} parent=15 // pred_check
          %p177 = pneg %p95
        $region22: #{tpu_custom_call.1} parent=15 // pred_check_branch
          %179 = sbr.rel (%p177) target = $region24
        $region23: #{tpu_custom_call.1} parent=15 // pred_region
          %s180 = sand.u32 %s85, 1
          %s181 = scalar_lea.sflag [#allocation7], %s180
          %s182 = sand.u32 %s85, 1
          %s183 = smul.addr %s182, 256
          %s184 = scalar_lea.vmem [#allocation6], %s183
          %s185 = smul.u32 32, %s26
          %s186 = smul.u32 2, %s27
          %188 = vsyncadd %s181, 0
          %s189 = smul.addr %s185, 2
          %s190 = sadd.s32 %s186, %s189
          %s191 = smul.addr %s190, 4
          %s192 = scalar_lea.hbm %s1, %s191
          %s193 = sshll.u32 %s192, 4
          %s194 = int_to_ptr.hbm [resolvable:$true] %s193
          %s195 = sshll.u32 %s184, 4
          %s196 = int_to_ptr.vmem [resolvable:$true] %s195
          %201 = dma.hbm_to_vmem [thread:$0]  %s194, 4096, %s196, %s181, 128, 128, 8
        $region24: #{tpu_custom_call.1} parent=15 // pred_fallthru
          _
      $region16: #{tpu_custom_call.1} parent=5 // pred_fallthru
        _
      %p202 = scmp.le.s32.totalorder 1, %s17
      %p203 = scmp.lt.s32.totalorder %s17, 7
      %p204 = pnand %p202, %p203
      %p205 = pneg %p204
      // Predicated region
      $region25: #{tpu_custom_call.1} parent=5 // pred_check
        _
      $region26: #{tpu_custom_call.1} parent=5 // pred_check_branch
        %207 = sbr.rel (%p204) target = $region28
      $region27: #{tpu_custom_call.1} parent=5 // pred_region
        %s208 = ssub.s32 %s17, 1
        %s209 = sand.u32 %s60, 1
        %s210 = scalar_lea.sflag [#allocation4], %s209
        %s211 = sand.u32 %s60, 1
        %s212 = smul.addr %s211, 128
        %s213 = scalar_lea.vmem [#allocation3], %s212
        // Predicated region
        $region29: #{tpu_custom_call.1} parent=27 // pred_check
          %p214 = pneg %p73
        $region30: #{tpu_custom_call.1} parent=27 // pred_check_branch
          %216 = sbr.rel (%p214) target = $region32
        $region31: #{tpu_custom_call.1} parent=27 // pred_region
          %218 = dma.done %s210, 2048
        $region32: #{tpu_custom_call.1} parent=27 // pred_fallthru
          _
        %s219 = sand.u32 %s88, 1
        %s220 = scalar_lea.sflag [#allocation7], %s219
        %s221 = sand.u32 %s88, 1
        %s222 = smul.addr %s221, 256
        %s223 = scalar_lea.vmem [#allocation6], %s222
        // Predicated region
        $region33: #{tpu_custom_call.1} parent=27 // pred_check
          %p224 = pneg %p101
        $region34: #{tpu_custom_call.1} parent=27 // pred_check_branch
          %226 = sbr.rel (%p224) target = $region36
        $region35: #{tpu_custom_call.1} parent=27 // pred_region
          %228 = dma.done %s220, 4096
        $region36: #{tpu_custom_call.1} parent=27 // pred_fallthru
          _
        %s229 = sand.u32 %s60, 1
        %s230 = scalar_lea.sflag [#allocation4], %s229
        %s231 = sand.u32 %s60, 1
        %s232 = smul.addr %s231, 128
        %s233 = scalar_lea.vmem [#allocation3], %s232
        %p234 = pneg %p73
        %p235 = pneg %p70
        %s236 = sand.u32 %s88, 1
        %s237 = scalar_lea.sflag [#allocation7], %s236
        %s238 = sand.u32 %s88, 1
        %s239 = smul.addr %s238, 256
        %s240 = scalar_lea.vmem [#allocation6], %s239
        %p241 = pneg %p101
        %p242 = pneg %p98
        %p243 = pneg %p131
        %p244 = pneg %p128
        %s245 = sand.u32 %s118, 1
        %s246 = scalar_lea.sflag [#allocation5], %s245
        %s247 = sand.u32 %s118, 1
        %s248 = smul.addr %s247, 128
        %s249 = scalar_lea.vmem [#allocation8], %s248
        %s250 = smul.u32 16, %s29
        %s251 = smul.u32 2, %s31
        %s252 = smul.u32 32, %s30
        %s253 = smul.u32 2, %s31
        %s254 = smul.u32 16, %s29
        %s255 = smul.u32 2, %s30
        %p256 = scmp.eq.s32.totalorder %s31, 0
        // Predicated region
        $region37: #{tpu_custom_call.1} parent=27 // pred_check
          %p257 = pneg %p256
        $region38: #{tpu_custom_call.1} parent=27 // pred_check_branch
          %259 = sbr.rel (%p257) target = $region40
        $region39: #{tpu_custom_call.1} parent=27 // pred_region
          %260 = vst [vmem:[#allocation2] sm:$0xff] 0.0
          %261 = vst [vmem:[#allocation2 + $0x8] sm:$0xff] 0.0
          %262 = vst [vmem:[#allocation2 + $0x10] sm:$0xff] 0.0
          %263 = vst [vmem:[#allocation2 + $0x18] sm:$0xff] 0.0
          %264 = vst [vmem:[#allocation2 + $0x20] sm:$0xff] 0.0
          %265 = vst [vmem:[#allocation2 + $0x28] sm:$0xff] 0.0
          %266 = vst [vmem:[#allocation2 + $0x30] sm:$0xff] 0.0
          %267 = vst [vmem:[#allocation2 + $0x38] sm:$0xff] 0.0
          %268 = vst [vmem:[#allocation2 + $0x40] sm:$0xff] 0.0
          %269 = vst [vmem:[#allocation2 + $0x48] sm:$0xff] 0.0
          %270 = vst [vmem:[#allocation2 + $0x50] sm:$0xff] 0.0
          %271 = vst [vmem:[#allocation2 + $0x58] sm:$0xff] 0.0
          %272 = vst [vmem:[#allocation2 + $0x60] sm:$0xff] 0.0
          %273 = vst [vmem:[#allocation2 + $0x68] sm:$0xff] 0.0
          %274 = vst [vmem:[#allocation2 + $0x70] sm:$0xff] 0.0
          %275 = vst [vmem:[#allocation2 + $0x78] sm:$0xff] 0.0
          %276 = vst [vmem:[#allocation2 + $0x80] sm:$0xff] 0.0
          %277 = vst [vmem:[#allocation2 + $0x88] sm:$0xff] 0.0
          %278 = vst [vmem:[#allocation2 + $0x90] sm:$0xff] 0.0
          %279 = vst [vmem:[#allocation2 + $0x98] sm:$0xff] 0.0
          %280 = vst [vmem:[#allocation2 + $0xa0] sm:$0xff] 0.0
          %281 = vst [vmem:[#allocation2 + $0xa8] sm:$0xff] 0.0
          %282 = vst [vmem:[#allocation2 + $0xb0] sm:$0xff] 0.0
          %283 = vst [vmem:[#allocation2 + $0xb8] sm:$0xff] 0.0
          %284 = vst [vmem:[#allocation2 + $0xc0] sm:$0xff] 0.0
          %285 = vst [vmem:[#allocation2 + $0xc8] sm:$0xff] 0.0
          %286 = vst [vmem:[#allocation2 + $0xd0] sm:$0xff] 0.0
          %287 = vst [vmem:[#allocation2 + $0xd8] sm:$0xff] 0.0
          %288 = vst [vmem:[#allocation2 + $0xe0] sm:$0xff] 0.0
          %289 = vst [vmem:[#allocation2 + $0xe8] sm:$0xff] 0.0
          %290 = vst [vmem:[#allocation2 + $0xf0] sm:$0xff] 0.0
          %291 = vst [vmem:[#allocation2 + $0xf8] sm:$0xff] 0.0
        $region40: #{tpu_custom_call.1} parent=27 // pred_fallthru
          _
        %v292 = vld [vmem:[%s213] sm:$0xff]
        %v293 = vld [vmem:[%s213 + $0x8] sm:$0xff]
        %v294 = vld [vmem:[%s213 + $0x10] sm:$0xff]
        %v295 = vld [vmem:[%s213 + $0x18] sm:$0xff]
        %v296 = vld [vmem:[%s213 + $0x20] sm:$0xff]
        %v297 = vld [vmem:[%s213 + $0x28] sm:$0xff]
        %v298 = vld [vmem:[%s213 + $0x30] sm:$0xff]
        %v299 = vld [vmem:[%s213 + $0x38] sm:$0xff]
        %v300 = vld [vmem:[%s213 + $0x40] sm:$0xff]
        %v301 = vld [vmem:[%s213 + $0x48] sm:$0xff]
        %v302 = vld [vmem:[%s213 + $0x50] sm:$0xff]
        %v303 = vld [vmem:[%s213 + $0x58] sm:$0xff]
        %v304 = vld [vmem:[%s213 + $0x60] sm:$0xff]
        %v305 = vld [vmem:[%s213 + $0x68] sm:$0xff]
        %v306 = vld [vmem:[%s213 + $0x70] sm:$0xff]
        %v307 = vld [vmem:[%s213 + $0x78] sm:$0xff]
        %v308 = vld [vmem:[%s223] sm:$0xff]
        %v309 = vld [vmem:[%s223 + $0x8] sm:$0xff]
        %v310 = vld [vmem:[%s223 + $0x10] sm:$0xff]
        %v311 = vld [vmem:[%s223 + $0x18] sm:$0xff]
        %v312 = vld [vmem:[%s223 + $0x20] sm:$0xff]
        %v313 = vld [vmem:[%s223 + $0x28] sm:$0xff]
        %v314 = vld [vmem:[%s223 + $0x30] sm:$0xff]
        %v315 = vld [vmem:[%s223 + $0x38] sm:$0xff]
        %v316 = vld [vmem:[%s223 + $0x40] sm:$0xff]
        %v317 = vld [vmem:[%s223 + $0x48] sm:$0xff]
        %v318 = vld [vmem:[%s223 + $0x50] sm:$0xff]
        %v319 = vld [vmem:[%s223 + $0x58] sm:$0xff]
        %v320 = vld [vmem:[%s223 + $0x60] sm:$0xff]
        %v321 = vld [vmem:[%s223 + $0x68] sm:$0xff]
        %v322 = vld [vmem:[%s223 + $0x70] sm:$0xff]
        %v323 = vld [vmem:[%s223 + $0x78] sm:$0xff]
        %v324 = vld [vmem:[%s223 + $0x80] sm:$0xff]
        %v325 = vld [vmem:[%s223 + $0x88] sm:$0xff]
        %v326 = vld [vmem:[%s223 + $0x90] sm:$0xff]
        %v327 = vld [vmem:[%s223 + $0x98] sm:$0xff]
        %v328 = vld [vmem:[%s223 + $0xa0] sm:$0xff]
        %v329 = vld [vmem:[%s223 + $0xa8] sm:$0xff]
        %v330 = vld [vmem:[%s223 + $0xb0] sm:$0xff]
        %v331 = vld [vmem:[%s223 + $0xb8] sm:$0xff]
        %v332 = vld [vmem:[%s223 + $0xc0] sm:$0xff]
        %v333 = vld [vmem:[%s223 + $0xc8] sm:$0xff]
        %v334 = vld [vmem:[%s223 + $0xd0] sm:$0xff]
        %v335 = vld [vmem:[%s223 + $0xd8] sm:$0xff]
        %v336 = vld [vmem:[%s223 + $0xe0] sm:$0xff]
        %v337 = vld [vmem:[%s223 + $0xe8] sm:$0xff]
        %v338 = vld [vmem:[%s223 + $0xf0] sm:$0xff]
        %v339 = vld [vmem:[%s223 + $0xf8] sm:$0xff]
        %v340 = vld [vmem:[#allocation2] sm:$0xff]
        %v341 = vld [vmem:[#allocation2 + $0x8] sm:$0xff]
        %v342 = vld [vmem:[#allocation2 + $0x10] sm:$0xff]
        %v343 = vld [vmem:[#allocation2 + $0x18] sm:$0xff]
        %v344 = vld [vmem:[#allocation2 + $0x20] sm:$0xff]
        %v345 = vld [vmem:[#allocation2 + $0x28] sm:$0xff]
        %v346 = vld [vmem:[#allocation2 + $0x30] sm:$0xff]
        %v347 = vld [vmem:[#allocation2 + $0x38] sm:$0xff]
        %v348 = vld [vmem:[#allocation2 + $0x40] sm:$0xff]
        %v349 = vld [vmem:[#allocation2 + $0x48] sm:$0xff]
        %v350 = vld [vmem:[#allocation2 + $0x50] sm:$0xff]
        %v351 = vld [vmem:[#allocation2 + $0x58] sm:$0xff]
        %v352 = vld [vmem:[#allocation2 + $0x60] sm:$0xff]
        %v353 = vld [vmem:[#allocation2 + $0x68] sm:$0xff]
        %v354 = vld [vmem:[#allocation2 + $0x70] sm:$0xff]
        %v355 = vld [vmem:[#allocation2 + $0x78] sm:$0xff]
        %v356 = vld [vmem:[#allocation2 + $0x80] sm:$0xff]
        %v357 = vld [vmem:[#allocation2 + $0x88] sm:$0xff]
        %v358 = vld [vmem:[#allocation2 + $0x90] sm:$0xff]
        %v359 = vld [vmem:[#allocation2 + $0x98] sm:$0xff]
        %v360 = vld [vmem:[#allocation2 + $0xa0] sm:$0xff]
        %v361 = vld [vmem:[#allocation2 + $0xa8] sm:$0xff]
        %v362 = vld [vmem:[#allocation2 + $0xb0] sm:$0xff]
        %v363 = vld [vmem:[#allocation2 + $0xb8] sm:$0xff]
        %v364 = vld [vmem:[#allocation2 + $0xc0] sm:$0xff]
        %v365 = vld [vmem:[#allocation2 + $0xc8] sm:$0xff]
        %v366 = vld [vmem:[#allocation2 + $0xd0] sm:$0xff]
        %v367 = vld [vmem:[#allocation2 + $0xd8] sm:$0xff]
        %v368 = vld [vmem:[#allocation2 + $0xe0] sm:$0xff]
        %v369 = vld [vmem:[#allocation2 + $0xe8] sm:$0xff]
        %v370 = vld [vmem:[#allocation2 + $0xf0] sm:$0xff]
        %v371 = vld [vmem:[#allocation2 + $0xf8] sm:$0xff]
        %v388 = vunpack.c.l.b16 %v292
        %v389 = vunpack.c.h.b16 %v292
        %v390 = vunpack.c.l.b16 %v293
        %v391 = vunpack.c.h.b16 %v293
        %v392 = vunpack.c.l.b16 %v294
        %v393 = vunpack.c.h.b16 %v294
        %v394 = vunpack.c.l.b16 %v295
        %v395 = vunpack.c.h.b16 %v295
        %v396 = vunpack.c.l.b16 %v296
        %v397 = vunpack.c.h.b16 %v296
        %v398 = vunpack.c.l.b16 %v297
        %v399 = vunpack.c.h.b16 %v297
        %v400 = vunpack.c.l.b16 %v298
        %v401 = vunpack.c.h.b16 %v298
        %v402 = vunpack.c.l.b16 %v299
        %v403 = vunpack.c.h.b16 %v299
        %v404 = vunpack.c.l.b16 %v300
        %v405 = vunpack.c.h.b16 %v300
        %v406 = vunpack.c.l.b16 %v301
        %v407 = vunpack.c.h.b16 %v301
        %v408 = vunpack.c.l.b16 %v302
        %v409 = vunpack.c.h.b16 %v302
        %v410 = vunpack.c.l.b16 %v303
        %v411 = vunpack.c.h.b16 %v303
        %v412 = vunpack.c.l.b16 %v304
        %v413 = vunpack.c.h.b16 %v304
        %v414 = vunpack.c.l.b16 %v305
        %v415 = vunpack.c.h.b16 %v305
        %v416 = vunpack.c.l.b16 %v306
        %v417 = vunpack.c.h.b16 %v306
        %v418 = vunpack.c.l.b16 %v307
        %v419 = vunpack.c.h.b16 %v307
        %v420 = vpack.c.b16 %v390, %v388
        %v421 = vpack.c.b16 %v391, %v389
        %v422 = vpack.c.b16 %v394, %v392
        %v423 = vpack.c.b16 %v395, %v393
        %v424 = vpack.c.b16 %v398, %v396
        %v425 = vpack.c.b16 %v399, %v397
        %v426 = vpack.c.b16 %v402, %v400
        %v427 = vpack.c.b16 %v403, %v401
        %v428 = vpack.c.b16 %v406, %v404
        %v429 = vpack.c.b16 %v407, %v405
        %v430 = vpack.c.b16 %v410, %v408
        %v431 = vpack.c.b16 %v411, %v409
        %v432 = vpack.c.b16 %v414, %v412
        %v433 = vpack.c.b16 %v415, %v413
        %v434 = vpack.c.b16 %v418, %v416
        %v435 = vpack.c.b16 %v419, %v417
        %v484 = vunpack.c.l.b16 %v308
        %v485 = vunpack.c.h.b16 %v308
        %v486 = vunpack.c.l.b16 %v309
        %v487 = vunpack.c.h.b16 %v309
        %v488 = vunpack.c.l.b16 %v310
        %v489 = vunpack.c.h.b16 %v310
        %v490 = vunpack.c.l.b16 %v311
        %v491 = vunpack.c.h.b16 %v311
        %v492 = vunpack.c.l.b16 %v312
        %v493 = vunpack.c.h.b16 %v312
        %v494 = vunpack.c.l.b16 %v313
        %v495 = vunpack.c.h.b16 %v313
        %v496 = vunpack.c.l.b16 %v314
        %v497 = vunpack.c.h.b16 %v314
        %v498 = vunpack.c.l.b16 %v315
        %v499 = vunpack.c.h.b16 %v315
        %v500 = vunpack.c.l.b16 %v316
        %v501 = vunpack.c.h.b16 %v316
        %v502 = vunpack.c.l.b16 %v317
        %v503 = vunpack.c.h.b16 %v317
        %v504 = vunpack.c.l.b16 %v318
        %v505 = vunpack.c.h.b16 %v318
        %v506 = vunpack.c.l.b16 %v319
        %v507 = vunpack.c.h.b16 %v319
        %v508 = vunpack.c.l.b16 %v320
        %v509 = vunpack.c.h.b16 %v320
        %v510 = vunpack.c.l.b16 %v321
        %v511 = vunpack.c.h.b16 %v321
        %v512 = vunpack.c.l.b16 %v322
        %v513 = vunpack.c.h.b16 %v322
        %v514 = vunpack.c.l.b16 %v323
        %v515 = vunpack.c.h.b16 %v323
        %v516 = vunpack.c.l.b16 %v324
        %v517 = vunpack.c.h.b16 %v324
        %v518 = vunpack.c.l.b16 %v325
        %v519 = vunpack.c.h.b16 %v325
        %v520 = vunpack.c.l.b16 %v326
        %v521 = vunpack.c.h.b16 %v326
        %v522 = vunpack.c.l.b16 %v327
        %v523 = vunpack.c.h.b16 %v327
        %v524 = vunpack.c.l.b16 %v328
        %v525 = vunpack.c.h.b16 %v328
        %v526 = vunpack.c.l.b16 %v329
        %v527 = vunpack.c.h.b16 %v329
        %v528 = vunpack.c.l.b16 %v330
        %v529 = vunpack.c.h.b16 %v330
        %v530 = vunpack.c.l.b16 %v331
        %v531 = vunpack.c.h.b16 %v331
        %v532 = vunpack.c.l.b16 %v332
        %v533 = vunpack.c.h.b16 %v332
        %v534 = vunpack.c.l.b16 %v333
        %v535 = vunpack.c.h.b16 %v333
        %v536 = vunpack.c.l.b16 %v334
        %v537 = vunpack.c.h.b16 %v334
        %v538 = vunpack.c.l.b16 %v335
        %v539 = vunpack.c.h.b16 %v335
        %v540 = vunpack.c.l.b16 %v336
        %v541 = vunpack.c.h.b16 %v336
        %v542 = vunpack.c.l.b16 %v337
        %v543 = vunpack.c.h.b16 %v337
        %v544 = vunpack.c.l.b16 %v338
        %v545 = vunpack.c.h.b16 %v338
        %v546 = vunpack.c.l.b16 %v339
        %v547 = vunpack.c.h.b16 %v339
        %v548 = vpack.c.b16 %v486, %v484
        %v549 = vpack.c.b16 %v487, %v485
        %v550 = vpack.c.b16 %v490, %v488
        %v551 = vpack.c.b16 %v491, %v489
        %v552 = vpack.c.b16 %v494, %v492
        %v553 = vpack.c.b16 %v495, %v493
        %v554 = vpack.c.b16 %v498, %v496
        %v555 = vpack.c.b16 %v499, %v497
        %v556 = vpack.c.b16 %v502, %v500
        %v557 = vpack.c.b16 %v503, %v501
        %v558 = vpack.c.b16 %v506, %v504
        %v559 = vpack.c.b16 %v507, %v505
        %v560 = vpack.c.b16 %v510, %v508
        %v561 = vpack.c.b16 %v511, %v509
        %v562 = vpack.c.b16 %v514, %v512
        %v563 = vpack.c.b16 %v515, %v513
        %v564 = vpack.c.b16 %v518, %v516
        %v565 = vpack.c.b16 %v519, %v517
        %v566 = vpack.c.b16 %v522, %v520
        %v567 = vpack.c.b16 %v523, %v521
        %v568 = vpack.c.b16 %v526, %v524
        %v569 = vpack.c.b16 %v527, %v525
        %v570 = vpack.c.b16 %v530, %v528
        %v571 = vpack.c.b16 %v531, %v529
        %v572 = vpack.c.b16 %v534, %v532
        %v573 = vpack.c.b16 %v535, %v533
        %v574 = vpack.c.b16 %v538, %v536
        %v575 = vpack.c.b16 %v539, %v537
        %v576 = vpack.c.b16 %v542, %v540
        %v577 = vpack.c.b16 %v543, %v541
        %v578 = vpack.c.b16 %v546, %v544
        %v579 = vpack.c.b16 %v547, %v545
        %612 = vmatpush.bf16.xpose.msra.mxu0 %v562
        %613 = vmatpush.bf16.xpose.msra.mxu0 %v560
        %614 = vmatpush.bf16.xpose.msra.mxu0 %v558
        %615 = vmatpush.bf16.xpose.msra.mxu0 %v556
        %616 = vmatpush.bf16.xpose.msra.mxu0 %v554
        %617 = vmatpush.bf16.xpose.msra.mxu0 %v552
        %618 = vmatpush.bf16.xpose.msra.mxu0 %v550
        %619 = vmatpush.bf16.xpose.msra.mxu0 %v548
        %620 = vmatmul.bf16.gmra.mxu0 %v420
        %v621 = vpop.f32.mrf.mxu0
        %v622 = vadd.f32 0.0, %v621
        %v623 = vpop.f32.mrf.mxu0
        %v624 = vadd.f32 0.0, %v623
        %625 = vmatmul.bf16.gmra.mxu0 %v422
        %v626 = vpop.f32.mrf.mxu0
        %v627 = vadd.f32 0.0, %v626
        %v628 = vpop.f32.mrf.mxu0
        %v629 = vadd.f32 0.0, %v628
        %630 = vmatmul.bf16.gmra.mxu0 %v424
        %v631 = vpop.f32.mrf.mxu0
        %v632 = vadd.f32 0.0, %v631
        %v633 = vpop.f32.mrf.mxu0
        %v634 = vadd.f32 0.0, %v633
        %635 = vmatmul.bf16.gmra.mxu0 %v426
        %v636 = vpop.f32.mrf.mxu0
        %v637 = vadd.f32 0.0, %v636
        %v638 = vpop.f32.mrf.mxu0
        %v639 = vadd.f32 0.0, %v638
        %640 = vmatmul.bf16.gmra.mxu0 %v428
        %v641 = vpop.f32.mrf.mxu0
        %v642 = vadd.f32 0.0, %v641
        %v643 = vpop.f32.mrf.mxu0
        %v644 = vadd.f32 0.0, %v643
        %645 = vmatmul.bf16.gmra.mxu0 %v430
        %v646 = vpop.f32.mrf.mxu0
        %v647 = vadd.f32 0.0, %v646
        %v648 = vpop.f32.mrf.mxu0
        %v649 = vadd.f32 0.0, %v648
        %650 = vmatmul.bf16.gmra.mxu0 %v432
        %v651 = vpop.f32.mrf.mxu0
        %v652 = vadd.f32 0.0, %v651
        %v653 = vpop.f32.mrf.mxu0
        %v654 = vadd.f32 0.0, %v653
        %655 = vmatmul.bf16.gmra.mxu0 %v434
        %v656 = vpop.f32.mrf.mxu0
        %v657 = vadd.f32 0.0, %v656
        %v658 = vpop.f32.mrf.mxu0
        %v659 = vadd.f32 0.0, %v658
        %660 = vdwg.mxu0
        %661 = vmatpush.bf16.xpose.msra.mxu0 %v563
        %662 = vmatpush.bf16.xpose.msra.mxu0 %v561
        %663 = vmatpush.bf16.xpose.msra.mxu0 %v559
        %664 = vmatpush.bf16.xpose.msra.mxu0 %v557
        %665 = vmatpush.bf16.xpose.msra.mxu0 %v555
        %666 = vmatpush.bf16.xpose.msra.mxu0 %v553
        %667 = vmatpush.bf16.xpose.msra.mxu0 %v551
        %668 = vmatpush.bf16.xpose.msra.mxu0 %v549
        %669 = vmatmul.bf16.gmra.mxu0 %v421
        %v670 = vpop.f32.mrf.mxu0
        %v671 = vadd.f32 %v622, %v670
        %v672 = vpop.f32.mrf.mxu0
        %v673 = vadd.f32 %v624, %v672
        %674 = vmatmul.bf16.gmra.mxu0 %v423
        %v675 = vpop.f32.mrf.mxu0
        %v676 = vadd.f32 %v627, %v675
        %v677 = vpop.f32.mrf.mxu0
        %v678 = vadd.f32 %v629, %v677
        %679 = vmatmul.bf16.gmra.mxu0 %v425
        %v680 = vpop.f32.mrf.mxu0
        %v681 = vadd.f32 %v632, %v680
        %v682 = vpop.f32.mrf.mxu0
        %v683 = vadd.f32 %v634, %v682
        %684 = vmatmul.bf16.gmra.mxu0 %v427
        %v685 = vpop.f32.mrf.mxu0
        %v686 = vadd.f32 %v637, %v685
        %v687 = vpop.f32.mrf.mxu0
        %v688 = vadd.f32 %v639, %v687
        %689 = vmatmul.bf16.gmra.mxu0 %v429
        %v690 = vpop.f32.mrf.mxu0
        %v691 = vadd.f32 %v642, %v690
        %v692 = vpop.f32.mrf.mxu0
        %v693 = vadd.f32 %v644, %v692
        %694 = vmatmul.bf16.gmra.mxu0 %v431
        %v695 = vpop.f32.mrf.mxu0
        %v696 = vadd.f32 %v647, %v695
        %v697 = vpop.f32.mrf.mxu0
        %v698 = vadd.f32 %v649, %v697
        %699 = vmatmul.bf16.gmra.mxu0 %v433
        %v700 = vpop.f32.mrf.mxu0
        %v701 = vadd.f32 %v652, %v700
        %v702 = vpop.f32.mrf.mxu0
        %v703 = vadd.f32 %v654, %v702
        %704 = vmatmul.bf16.gmra.mxu0 %v435
        %v705 = vpop.f32.mrf.mxu0
        %v706 = vadd.f32 %v657, %v705
        %v707 = vpop.f32.mrf.mxu0
        %v708 = vadd.f32 %v659, %v707
        %709 = vdwg.mxu0
        %710 = vmatpush.bf16.xpose.msra.mxu0 %v578
        %711 = vmatpush.bf16.xpose.msra.mxu0 %v576
        %712 = vmatpush.bf16.xpose.msra.mxu0 %v574
        %713 = vmatpush.bf16.xpose.msra.mxu0 %v572
        %714 = vmatpush.bf16.xpose.msra.mxu0 %v570
        %715 = vmatpush.bf16.xpose.msra.mxu0 %v568
        %716 = vmatpush.bf16.xpose.msra.mxu0 %v566
        %717 = vmatpush.bf16.xpose.msra.mxu0 %v564
        %718 = vmatmul.bf16.gmra.mxu0 %v420
        %v719 = vpop.f32.mrf.mxu0
        %v720 = vadd.f32 0.0, %v719
        %v721 = vpop.f32.mrf.mxu0
        %v722 = vadd.f32 0.0, %v721
        %723 = vmatmul.bf16.gmra.mxu0 %v422
        %v724 = vpop.f32.mrf.mxu0
        %v725 = vadd.f32 0.0, %v724
        %v726 = vpop.f32.mrf.mxu0
        %v727 = vadd.f32 0.0, %v726
        %728 = vmatmul.bf16.gmra.mxu0 %v424
        %v729 = vpop.f32.mrf.mxu0
        %v730 = vadd.f32 0.0, %v729
        %v731 = vpop.f32.mrf.mxu0
        %v732 = vadd.f32 0.0, %v731
        %733 = vmatmul.bf16.gmra.mxu0 %v426
        %v734 = vpop.f32.mrf.mxu0
        %v735 = vadd.f32 0.0, %v734
        %v736 = vpop.f32.mrf.mxu0
        %v737 = vadd.f32 0.0, %v736
        %738 = vmatmul.bf16.gmra.mxu0 %v428
        %v739 = vpop.f32.mrf.mxu0
        %v740 = vadd.f32 0.0, %v739
        %v741 = vpop.f32.mrf.mxu0
        %v742 = vadd.f32 0.0, %v741
        %743 = vmatmul.bf16.gmra.mxu0 %v430
        %v744 = vpop.f32.mrf.mxu0
        %v745 = vadd.f32 0.0, %v744
        %v746 = vpop.f32.mrf.mxu0
        %v747 = vadd.f32 0.0, %v746
        %748 = vmatmul.bf16.gmra.mxu0 %v432
        %v749 = vpop.f32.mrf.mxu0
        %v750 = vadd.f32 0.0, %v749
        %v751 = vpop.f32.mrf.mxu0
        %v752 = vadd.f32 0.0, %v751
        %753 = vmatmul.bf16.gmra.mxu0 %v434
        %v754 = vpop.f32.mrf.mxu0
        %v755 = vadd.f32 0.0, %v754
        %v756 = vpop.f32.mrf.mxu0
        %v757 = vadd.f32 0.0, %v756
        %758 = vdwg.mxu0
        %759 = vmatpush.bf16.xpose.msra.mxu0 %v579
        %760 = vmatpush.bf16.xpose.msra.mxu0 %v577
        %761 = vmatpush.bf16.xpose.msra.mxu0 %v575
        %762 = vmatpush.bf16.xpose.msra.mxu0 %v573
        %763 = vmatpush.bf16.xpose.msra.mxu0 %v571
        %764 = vmatpush.bf16.xpose.msra.mxu0 %v569
        %765 = vmatpush.bf16.xpose.msra.mxu0 %v567
        %766 = vmatpush.bf16.xpose.msra.mxu0 %v565
        %767 = vmatmul.bf16.gmra.mxu0 %v421
        %v768 = vpop.f32.mrf.mxu0
        %v769 = vadd.f32 %v720, %v768
        %v770 = vpop.f32.mrf.mxu0
        %v771 = vadd.f32 %v722, %v770
        %772 = vmatmul.bf16.gmra.mxu0 %v423
        %v773 = vpop.f32.mrf.mxu0
        %v774 = vadd.f32 %v725, %v773
        %v775 = vpop.f32.mrf.mxu0
        %v776 = vadd.f32 %v727, %v775
        %777 = vmatmul.bf16.gmra.mxu0 %v425
        %v778 = vpop.f32.mrf.mxu0
        %v779 = vadd.f32 %v730, %v778
        %v780 = vpop.f32.mrf.mxu0
        %v781 = vadd.f32 %v732, %v780
        %782 = vmatmul.bf16.gmra.mxu0 %v427
        %v783 = vpop.f32.mrf.mxu0
        %v784 = vadd.f32 %v735, %v783
        %v785 = vpop.f32.mrf.mxu0
        %v786 = vadd.f32 %v737, %v785
        %787 = vmatmul.bf16.gmra.mxu0 %v429
        %v788 = vpop.f32.mrf.mxu0
        %v789 = vadd.f32 %v740, %v788
        %v790 = vpop.f32.mrf.mxu0
        %v791 = vadd.f32 %v742, %v790
        %792 = vmatmul.bf16.gmra.mxu0 %v431
        %v793 = vpop.f32.mrf.mxu0
        %v794 = vadd.f32 %v745, %v793
        %v795 = vpop.f32.mrf.mxu0
        %v796 = vadd.f32 %v747, %v795
        %797 = vmatmul.bf16.gmra.mxu0 %v433
        %v798 = vpop.f32.mrf.mxu0
        %v799 = vadd.f32 %v750, %v798
        %v800 = vpop.f32.mrf.mxu0
        %v801 = vadd.f32 %v752, %v800
        %802 = vmatmul.bf16.gmra.mxu0 %v435
        %v803 = vpop.f32.mrf.mxu0
        %v804 = vadd.f32 %v755, %v803
        %v805 = vpop.f32.mrf.mxu0
        %v806 = vadd.f32 %v757, %v805
        %807 = vdwg.mxu0
        %v808 = vadd.f32 %v340, %v671
        %v809 = vadd.f32 %v341, %v769
        %v810 = vadd.f32 %v342, %v673
        %v811 = vadd.f32 %v343, %v771
        %v812 = vadd.f32 %v344, %v676
        %v813 = vadd.f32 %v345, %v774
        %v814 = vadd.f32 %v346, %v678
        %v815 = vadd.f32 %v347, %v776
        %v816 = vadd.f32 %v348, %v681
        %v817 = vadd.f32 %v349, %v779
        %v818 = vadd.f32 %v350, %v683
        %v819 = vadd.f32 %v351, %v781
        %v820 = vadd.f32 %v352, %v686
        %v821 = vadd.f32 %v353, %v784
        %v822 = vadd.f32 %v354, %v688
        %v823 = vadd.f32 %v355, %v786
        %v824 = vadd.f32 %v356, %v691
        %v825 = vadd.f32 %v357, %v789
        %v826 = vadd.f32 %v358, %v693
        %v827 = vadd.f32 %v359, %v791
        %v828 = vadd.f32 %v360, %v696
        %v829 = vadd.f32 %v361, %v794
        %v830 = vadd.f32 %v362, %v698
        %v831 = vadd.f32 %v363, %v796
        %v832 = vadd.f32 %v364, %v701
        %v833 = vadd.f32 %v365, %v799
        %v834 = vadd.f32 %v366, %v703
        %v835 = vadd.f32 %v367, %v801
        %v836 = vadd.f32 %v368, %v706
        %v837 = vadd.f32 %v369, %v804
        %v838 = vadd.f32 %v370, %v708
        %v839 = vadd.f32 %v371, %v806
        %840 = vst [vmem:[#allocation2] sm:$0xff] %v808
        %841 = vst [vmem:[#allocation2 + $0x8] sm:$0xff] %v809
        %842 = vst [vmem:[#allocation2 + $0x10] sm:$0xff] %v810
        %843 = vst [vmem:[#allocation2 + $0x18] sm:$0xff] %v811
        %844 = vst [vmem:[#allocation2 + $0x20] sm:$0xff] %v812
        %845 = vst [vmem:[#allocation2 + $0x28] sm:$0xff] %v813
        %846 = vst [vmem:[#allocation2 + $0x30] sm:$0xff] %v814
        %847 = vst [vmem:[#allocation2 + $0x38] sm:$0xff] %v815
        %848 = vst [vmem:[#allocation2 + $0x40] sm:$0xff] %v816
        %849 = vst [vmem:[#allocation2 + $0x48] sm:$0xff] %v817
        %850 = vst [vmem:[#allocation2 + $0x50] sm:$0xff] %v818
        %851 = vst [vmem:[#allocation2 + $0x58] sm:$0xff] %v819
        %852 = vst [vmem:[#allocation2 + $0x60] sm:$0xff] %v820
        %853 = vst [vmem:[#allocation2 + $0x68] sm:$0xff] %v821
        %854 = vst [vmem:[#allocation2 + $0x70] sm:$0xff] %v822
        %855 = vst [vmem:[#allocation2 + $0x78] sm:$0xff] %v823
        %856 = vst [vmem:[#allocation2 + $0x80] sm:$0xff] %v824
        %857 = vst [vmem:[#allocation2 + $0x88] sm:$0xff] %v825
        %858 = vst [vmem:[#allocation2 + $0x90] sm:$0xff] %v826
        %859 = vst [vmem:[#allocation2 + $0x98] sm:$0xff] %v827
        %860 = vst [vmem:[#allocation2 + $0xa0] sm:$0xff] %v828
        %861 = vst [vmem:[#allocation2 + $0xa8] sm:$0xff] %v829
        %862 = vst [vmem:[#allocation2 + $0xb0] sm:$0xff] %v830
        %863 = vst [vmem:[#allocation2 + $0xb8] sm:$0xff] %v831
        %864 = vst [vmem:[#allocation2 + $0xc0] sm:$0xff] %v832
        %865 = vst [vmem:[#allocation2 + $0xc8] sm:$0xff] %v833
        %866 = vst [vmem:[#allocation2 + $0xd0] sm:$0xff] %v834
        %867 = vst [vmem:[#allocation2 + $0xd8] sm:$0xff] %v835
        %868 = vst [vmem:[#allocation2 + $0xe0] sm:$0xff] %v836
        %869 = vst [vmem:[#allocation2 + $0xe8] sm:$0xff] %v837
        %870 = vst [vmem:[#allocation2 + $0xf0] sm:$0xff] %v838
        %871 = vst [vmem:[#allocation2 + $0xf8] sm:$0xff] %v839
        // Predicated region
        $region41: #{tpu_custom_call.1} parent=27 // pred_check
          %p872 = pneg %p256
        $region42: #{tpu_custom_call.1} parent=27 // pred_check_branch
          %874 = sbr.rel (%p872) target = $region44
        $region43: #{tpu_custom_call.1} parent=27 // pred_region
          %v875 = vld [vmem:[#allocation2] sm:$0xff]
          %v876 = vld [vmem:[#allocation2 + $0x8] sm:$0xff]
          %v877 = vld [vmem:[#allocation2 + $0x10] sm:$0xff]
          %v878 = vld [vmem:[#allocation2 + $0x18] sm:$0xff]
          %v879 = vld [vmem:[#allocation2 + $0x20] sm:$0xff]
          %v880 = vld [vmem:[#allocation2 + $0x28] sm:$0xff]
          %v881 = vld [vmem:[#allocation2 + $0x30] sm:$0xff]
          %v882 = vld [vmem:[#allocation2 + $0x38] sm:$0xff]
          %v883 = vld [vmem:[#allocation2 + $0x40] sm:$0xff]
          %v884 = vld [vmem:[#allocation2 + $0x48] sm:$0xff]
          %v885 = vld [vmem:[#allocation2 + $0x50] sm:$0xff]
          %v886 = vld [vmem:[#allocation2 + $0x58] sm:$0xff]
          %v887 = vld [vmem:[#allocation2 + $0x60] sm:$0xff]
          %v888 = vld [vmem:[#allocation2 + $0x68] sm:$0xff]
          %v889 = vld [vmem:[#allocation2 + $0x70] sm:$0xff]
          %v890 = vld [vmem:[#allocation2 + $0x78] sm:$0xff]
          %v891 = vld [vmem:[#allocation2 + $0x80] sm:$0xff]
          %v892 = vld [vmem:[#allocation2 + $0x88] sm:$0xff]
          %v893 = vld [vmem:[#allocation2 + $0x90] sm:$0xff]
          %v894 = vld [vmem:[#allocation2 + $0x98] sm:$0xff]
          %v895 = vld [vmem:[#allocation2 + $0xa0] sm:$0xff]
          %v896 = vld [vmem:[#allocation2 + $0xa8] sm:$0xff]
          %v897 = vld [vmem:[#allocation2 + $0xb0] sm:$0xff]
          %v898 = vld [vmem:[#allocation2 + $0xb8] sm:$0xff]
          %v899 = vld [vmem:[#allocation2 + $0xc0] sm:$0xff]
          %v900 = vld [vmem:[#allocation2 + $0xc8] sm:$0xff]
          %v901 = vld [vmem:[#allocation2 + $0xd0] sm:$0xff]
          %v902 = vld [vmem:[#allocation2 + $0xd8] sm:$0xff]
          %v903 = vld [vmem:[#allocation2 + $0xe0] sm:$0xff]
          %v904 = vld [vmem:[#allocation2 + $0xe8] sm:$0xff]
          %v905 = vld [vmem:[#allocation2 + $0xf0] sm:$0xff]
          %v906 = vld [vmem:[#allocation2 + $0xf8] sm:$0xff]
          %v907 = vpack.c.bf16 %v876, %v875
          %v908 = vpack.c.bf16 %v878, %v877
          %v909 = vpack.c.bf16 %v880, %v879
          %v910 = vpack.c.bf16 %v882, %v881
          %v911 = vpack.c.bf16 %v884, %v883
          %v912 = vpack.c.bf16 %v886, %v885
          %v913 = vpack.c.bf16 %v888, %v887
          %v914 = vpack.c.bf16 %v890, %v889
          %v915 = vpack.c.bf16 %v892, %v891
          %v916 = vpack.c.bf16 %v894, %v893
          %v917 = vpack.c.bf16 %v896, %v895
          %v918 = vpack.c.bf16 %v898, %v897
          %v919 = vpack.c.bf16 %v900, %v899
          %v920 = vpack.c.bf16 %v902, %v901
          %v921 = vpack.c.bf16 %v904, %v903
          %v922 = vpack.c.bf16 %v906, %v905
          %923 = vst [vmem:[%s249] sm:$0xff] %v907
          %924 = vst [vmem:[%s249 + $0x8] sm:$0xff] %v908
          %925 = vst [vmem:[%s249 + $0x10] sm:$0xff] %v909
          %926 = vst [vmem:[%s249 + $0x18] sm:$0xff] %v910
          %927 = vst [vmem:[%s249 + $0x20] sm:$0xff] %v911
          %928 = vst [vmem:[%s249 + $0x28] sm:$0xff] %v912
          %929 = vst [vmem:[%s249 + $0x30] sm:$0xff] %v913
          %930 = vst [vmem:[%s249 + $0x38] sm:$0xff] %v914
          %931 = vst [vmem:[%s249 + $0x40] sm:$0xff] %v915
          %932 = vst [vmem:[%s249 + $0x48] sm:$0xff] %v916
          %933 = vst [vmem:[%s249 + $0x50] sm:$0xff] %v917
          %934 = vst [vmem:[%s249 + $0x58] sm:$0xff] %v918
          %935 = vst [vmem:[%s249 + $0x60] sm:$0xff] %v919
          %936 = vst [vmem:[%s249 + $0x68] sm:$0xff] %v920
          %937 = vst [vmem:[%s249 + $0x70] sm:$0xff] %v921
          %938 = vst [vmem:[%s249 + $0x78] sm:$0xff] %v922
        $region44: #{tpu_custom_call.1} parent=27 // pred_fallthru
          _
        %s939 = sand.u32 %s118, 1
        %s940 = scalar_lea.sflag [#allocation5], %s939
        %s941 = sand.u32 %s118, 1
        %s942 = smul.addr %s941, 128
        %s943 = scalar_lea.vmem [#allocation8], %s942
        // Predicated region
        $region45: #{tpu_custom_call.1} parent=27 // pred_check
          %p944 = pneg %p128
        $region46: #{tpu_custom_call.1} parent=27 // pred_check_branch
          %946 = sbr.rel (%p944) target = $region48
        $region47: #{tpu_custom_call.1} parent=27 // pred_region
          %s947 = smul.u32 16, %s29
          %s948 = smul.u32 2, %s30
          %950 = vsyncadd %s940, 0
          %s951 = smul.addr %s947, 6
          %s952 = sadd.s32 %s948, %s951
          %s953 = smul.addr %s28, 96
          %s954 = sadd.s32 %s952, %s953
          %s955 = smul.addr %s954, 4
          %s956 = scalar_lea.hbm %s2, %s955
          %s957 = sshll.u32 %s943, 4
          %s958 = int_to_ptr.vmem [resolvable:$true] %s957
          %s959 = sshll.u32 %s956, 4
          %s960 = int_to_ptr.hbm [resolvable:$true] %s959
          %965 = dma.vmem_to_hbm [thread:$0]  %s958, 2048, %s960, %s940, 128, 384, 8
        $region48: #{tpu_custom_call.1} parent=27 // pred_fallthru
          _
      $region28: #{tpu_custom_call.1} parent=5 // pred_fallthru
        _
      %p966 = scmp.le.s32.totalorder 2, %s17
      // Predicated region
      $region49: #{tpu_custom_call.1} parent=5 // pred_check
        %p967 = pneg %p966
      $region50: #{tpu_custom_call.1} parent=5 // pred_check_branch
        %969 = sbr.rel (%p967) target = $region52
      $region51: #{tpu_custom_call.1} parent=5 // pred_region
        %s970 = ssub.s32 %s17, 2
        // Predicated region
        $region53: #{tpu_custom_call.1} parent=51 // pred_check
          %p971 = pneg %p134
        $region54: #{tpu_custom_call.1} parent=51 // pred_check_branch
          %973 = sbr.rel (%p971) target = $region56
        $region55: #{tpu_custom_call.1} parent=51 // pred_region
          %s974 = sand.u32 %s119, 1
          %s975 = scalar_lea.sflag [#allocation5], %s974
          %s976 = sand.u32 %s119, 1
          %s977 = smul.addr %s976, 128
          %s978 = scalar_lea.vmem [#allocation8], %s977
          %980 = dma.done %s975, 2048
        $region56: #{tpu_custom_call.1} parent=51 // pred_fallthru
          _
      $region52: #{tpu_custom_call.1} parent=5 // pred_fallthru
        _
    $region6: #{tpu_custom_call.1} parent=1 // loop_footer
      %s21 = sadd.s32 1, %s17
    $region7: #{tpu_custom_call.1} parent=1 // loop_footer_branch
      %16 = sbr.rel target = $region3
    $region8: #{tpu_custom_call.1} parent=1 // loop_exit
      _
    %981 = vsyncpa [#allocation4], 1
    %s982 = scalar_lea.sflag [#allocation4], 1
    %983 = vsyncpa %s982, 1
    %984 = vsyncpa [#allocation7], 1
    %s985 = scalar_lea.sflag [#allocation7], 1
    %986 = vsyncpa %s985, 1
    %987 = vsyncpa [#allocation5], 1
    %s988 = scalar_lea.sflag [#allocation5], 1
    %989 = vsyncpa %s988, 1

</llo_original>
